<compile_context>
chip_gen: v5e
topology: v5e:2x2
jax: 0.10.0
libtpu: 0.0.40
codegen_flags: <defaults>
</compile_context>

<pallas_src>
import jax
import jax.numpy as jnp
from jax.experimental import pallas as pl
from jax.experimental.pallas import tpu as pltpu

MEAN = jnp.array([0.485, 0.456, 0.406], dtype=jnp.float32)
STD = jnp.array([0.229, 0.224, 0.225], dtype=jnp.float32)


def _normalizer_kernel(scale_ref, shift_ref, x_ref, o_ref):
    # x_ref: (rows, lane_tile) in the input's native dtype; cast in VMEM.
    # scale_ref / shift_ref: (rows, 1) f32, broadcast across lanes on the VPU.
    x = x_ref[...].astype(jnp.float32)
    o_ref[...] = (x * scale_ref[...] - shift_ref[...]).astype(o_ref.dtype)


def _physical_vmem_bytes():
    """Per-core physical VMEM; conservative fallback if the query fails."""
    try:
        info = pltpu.get_tpu_info()
        v = int(getattr(info, "vmem_capacity_bytes", 0))
        if v > 0:
            return v
    except Exception:
        pass
    return 64 << 20  # v7x per-TensorCore size (smallest of v5e/v6e/v7x)


def _pick_fold(lanes):
    """Fold a small power-of-two factor of H*W from the lane axis onto the
    sublane axis so blocks have >= 8 dense sublanes. Only fold when plenty of
    lanes remain so vld/vst stay lane-dense."""
    for f in (8, 4, 2):
        if lanes % f == 0 and lanes // f >= 1024:
            return f
    return 1


def _pick_lane_tile(lanes, rows, block_bytes):
    """Lane-tile selection. The tile:
      * is a multiple of 128 (or the full lane extent when lanes <= 128),
      * keeps an f32 block of (rows, tile) within `block_bytes`,
      * is capped near ceil(lanes/2) so the parallel grid axis has >= 2 steps
        whenever lanes > 128 (lets v7x megacore use both TensorCores).
    It does NOT need to divide `lanes`: the grid uses pl.cdiv and the trailing
    block is a masked edge block."""
    if lanes <= 128:
        return lanes
    budget_elems = max(block_bytes // 4, 128 * max(rows, 1))
    tile = max(128, (budget_elems // max(rows, 1) // 128) * 128)
    half_up = (((lanes + 1) // 2) + 127) // 128 * 128
    return min(tile, half_up)


def normalizer(x, *, block_bytes=8 * 1024 * 1024, out_dtype=jnp.float32):
    """x: (N, C, H, W) array with values in 0..255 (uint8, bf16 or f32), C >= 3.
    Returns an array of the same shape in `out_dtype` (float32 by default)."""
    N, C, H, W = x.shape
    R, L = N * C, H * W
    out_dtype = jnp.dtype(out_dtype)

    # Per-row affine coefficients reproducing the PyTorch loop exactly.
    # Flattened row index = n*C + c, so batch 0 / channels 0..2 are rows 0..2:
    #   rows 0..2:  x/(255*std[c]) - mean[c]/std[c]
    #   elsewhere:  x/255
    scale = jnp.full((R, 1), 1.0 / 255.0, dtype=jnp.float32)
    shift = jnp.zeros((R, 1), dtype=jnp.float32)
    ch = min(C, 3)
    scale = scale.at[:ch, 0].set(1.0 / (255.0 * STD[:ch]))
    shift = shift.at[:ch, 0].set(MEAN[:ch] / STD[:ch])

    # Sublane fold: (R, L) -> (R*fold, L//fold).  Each original row becomes
    # `fold` consecutive sub-rows, so coefficients are repeated to match.
    fold = _pick_fold(L)
    R2, L2 = R * fold, L // fold
    x2 = x.reshape(R2, L2)  # free metadata reshape, lane-dense layout
    if fold > 1:
        scale = jnp.repeat(scale, fold, axis=0)
        shift = jnp.repeat(shift, fold, axis=0)

    # Generation-aware VMEM budget (~25% headroom below physical VMEM):
    # ~48 MiB on v7x, ~96 MiB on v5e/v6e.  Clamp the block budget so the
    # double-buffered in+out blocks always fit.
    vmem_cap = _physical_vmem_bytes() * 3 // 4
    eff_block_bytes = min(block_bytes, vmem_cap // 5)

    lane_tile = _pick_lane_tile(L2, R2, eff_block_bytes)
    grid = (pl.cdiv(L2, lane_tile),)

    in_block = R2 * lane_tile * x2.dtype.itemsize
    out_block = R2 * lane_tile * out_dtype.itemsize
    vmem_limit = int(min(max(2 * (in_block + out_block) + (4 << 20), 32 << 20),
                         vmem_cap))

    cost = pl.CostEstimate(
        flops=2 * R2 * L2,
        transcendentals=0,
        bytes_accessed=R2 * L2 * (x2.dtype.itemsize + out_dtype.itemsize),
    )

    out2 = pl.pallas_call(
        _normalizer_kernel,
        out_shape=jax.ShapeDtypeStruct((R2, L2), out_dtype),
        grid=grid,
        in_specs=[
            pl.BlockSpec((R2, 1), lambda j: (0, 0)),           # scale (grid-resident)
            pl.BlockSpec((R2, 1), lambda j: (0, 0)),           # shift (grid-resident)
            pl.BlockSpec((R2, lane_tile), lambda j: (0, j)),   # x (masked edge block ok)
        ],
        out_specs=pl.BlockSpec((R2, lane_tile), lambda j: (0, j)),
        compiler_params=pltpu.CompilerParams(
            dimension_semantics=("parallel",),
            vmem_limit_bytes=vmem_limit,
        ),
        cost_estimate=cost,
    )(scale, shift, x2)

    return out2.reshape(N, C, H, W)


def normalizer_ref(x):
    """Pure-JAX reference matching the PyTorch module (always f32 out)."""
    t = x.astype(jnp.float32) / 255.0
    ch = min(x.shape[1], 3)
    norm0 = (t[0, :ch] - MEAN[:ch, None, None]) / STD[:ch, None, None]
    return t.at[0, :ch].set(norm0)


def _check(x, atol=1e-5, rtol=1e-5, **kw):
    out = jax.block_until_ready(normalizer(x, **kw))
    ref = normalizer_ref(x)
    assert out.shape == ref.shape
    assert out.dtype == jnp.dtype(kw.get("out_dtype", jnp.float32))
    assert jnp.allclose(out.astype(jnp.float32), ref, atol=atol, rtol=rtol), \
        "mismatch vs reference"


if __name__ == "__main__":
    key = jax.random.PRNGKey(0)
    k1, k2, k3, k4 = jax.random.split(key, 4)

    # 1) f32 input 0..255: batch=2, 3 channels, 16x16 (NCHW).
    x1 = jax.random.uniform(k1, (2, 3, 16, 16), dtype=jnp.float32) * 255.0
    _check(x1)

    # 2) uint8 input (cheapest caller contract; kernel casts in VMEM), C=4 so
    #    only batch-0 channels 0..2 get mean/std normalization.
    x2 = jax.random.randint(k2, (2, 4, 16, 16), 0, 256,
                            dtype=jnp.int32).astype(jnp.uint8)
    _check(x2)

    # 3) Ragged spatial size (H*W=200, not a multiple of 128): cdiv-tiled
    #    2-step grid with a masked trailing edge block.
    x3 = jax.random.uniform(k3, (1, 3, 10, 20), dtype=jnp.float32) * 255.0
    _check(x3)

    # 4) Larger spatial size exercising the sublane fold (fold=8) plus a
    #    2-step parallel grid with a masked edge block.
    x4 = jax.random.uniform(k4, (1, 3, 96, 96), dtype=jnp.float32) * 255.0
    _check(x4)

    # 5) Optional bf16 output (reduced write traffic); looser tolerance since
    #    this intentionally deviates from the f32 reference precision.
    _check(x1, out_dtype=jnp.bfloat16, atol=2e-2, rtol=2e-2)

    print("KERNEL_OK")
</pallas_src>

<mosaic_0001>
module attributes {stable_mosaic.version = 11 : i64} {
  func.func @_normalizer_kernel(%arg0: i32, %arg1: memref<6x1xf32, #tpu.memory_space<vmem>>, %arg2: memref<6x1xf32, #tpu.memory_space<vmem>>, %arg3: memref<6x128xf32, #tpu.memory_space<vmem>>, %arg4: memref<6x128xf32, #tpu.memory_space<vmem>>) attributes {dimension_semantics = [#tpu.dimension_semantics<parallel>], iteration_bounds = array<i64: 2>, scalar_prefetch = 0 : i64, scratch_operands = 0 : i64, tpu.core_type = #tpu.core_type<tc>, window_params = [{pipeline_mode = #tpu.pipeline_mode<synchronous>, transform_indices = @transform_0, window_bounds = array<i64: 6, 1>}, {pipeline_mode = #tpu.pipeline_mode<synchronous>, transform_indices = @transform_1, window_bounds = array<i64: 6, 1>}, {transform_indices = @transform_2, window_bounds = array<i64: 6, 128>}, {transform_indices = @transform_3, window_bounds = array<i64: 6, 128>}]} {
    %c0 = arith.constant 0 : index
    %c0_0 = arith.constant 0 : index
    %0 = vector.load %arg3[%c0, %c0_0] : memref<6x128xf32, #tpu.memory_space<vmem>>, vector<6x128xf32>
    %c0_1 = arith.constant 0 : index
    %c0_2 = arith.constant 0 : index
    %1 = vector.load %arg1[%c0_1, %c0_2] : memref<6x1xf32, #tpu.memory_space<vmem>>, vector<6x1xf32>
    %2 = vector.broadcast %1 : vector<6x1xf32> to vector<6x128xf32>
    %3 = arith.mulf %0, %2 : vector<6x128xf32>
    %c0_3 = arith.constant 0 : index
    %c0_4 = arith.constant 0 : index
    %4 = vector.load %arg2[%c0_3, %c0_4] : memref<6x1xf32, #tpu.memory_space<vmem>>, vector<6x1xf32>
    %5 = vector.broadcast %4 : vector<6x1xf32> to vector<6x128xf32>
    %6 = arith.subf %3, %5 : vector<6x128xf32>
    %c0_5 = arith.constant 0 : index
    %c0_6 = arith.constant 0 : index
    %7 = vector.load %arg4[%c0_5, %c0_6] : memref<6x128xf32, #tpu.memory_space<vmem>>, vector<6x128xf32>
    tpu.vector_store %arg4[%c0_5, %c0_6], %6 {strides = array<i32>} : memref<6x128xf32, #tpu.memory_space<vmem>>, vector<6x128xf32>,
    return
  }
  func.func @transform_0(%arg0: i32) -> (i32, i32) {
    %c0_i32 = arith.constant 0 : i32
    %c0_i32_0 = arith.constant 0 : i32
    %c0_i32_1 = arith.constant 0 : i32
    return %c0_i32, %c0_i32_0 : i32, i32
  }
  func.func @transform_1(%arg0: i32) -> (i32, i32) {
    %c0_i32 = arith.constant 0 : i32
    %c0_i32_0 = arith.constant 0 : i32
    %c0_i32_1 = arith.constant 0 : i32
    return %c0_i32, %c0_i32_0 : i32, i32
  }
  func.func @transform_2(%arg0: i32) -> (i32, i32) {
    %c0_i32 = arith.constant 0 : i32
    %c0_i32_0 = arith.constant 0 : i32
    return %c0_i32, %arg0 : i32, i32
  }
  func.func @transform_3(%arg0: i32) -> (i32, i32) {
    %c0_i32 = arith.constant 0 : i32
    %c0_i32_0 = arith.constant 0 : i32
    return %c0_i32, %arg0 : i32, i32
  }
}

</mosaic_0001>

<llo_original>
// kernel: tpu_custom_call.1
$region0: #{tpu_custom_call.1}
  #allocation0 [shape = 'u32[]', space=smem, size = 0x4, offset = 0x4, fixed_abs, tag = 'smem constant byte address 0x4 - core index']
  #allocation1 [shape = 'u32[72,128]{1,0:T(1,128)}', space=vmem, size = 0x9000, scoped, tag = 'internal scratch']
  %s0 = inlined_call_operand.vmem [shape: f32[6,1], index: 0, kind: input, shape index: {}]
  %s1 = inlined_call_operand.vmem [shape: f32[6,1], index: 1, kind: input, shape index: {}]
  %s2 = inlined_call_operand.vmem [shape: f32[6,256], index: 2, kind: input, shape index: {}]
  %s3 = inlined_call_operand.hbm [shape: f32[6,256], index: 3, kind: output, shape index: {}]
  %s4 = sld [smem:[#allocation0]]
  $region45: #{tpu_custom_call.1} parent=0
    _
  %s6 = ssub.s32 1, %s4
  %s7 = scalar_select 0, %s6, %s4
  $region1: #{tpu_custom_call.1} parent=0
    #allocation2 [shape = 'u8[8192]{0}', space=vmem, size = 0x2000, scoped, tag = 'output window, operand 0']
    #allocation3 [shape = 's32[2]{0}', space=sflag, size = 0x8, scoped, tag = 'scoped memory for tpu_custom_call.1']
    %8 = vsyncpa [#allocation3], 0
    %s9 = scalar_lea.sflag [#allocation3], 1
    %10 = vsyncpa %s9, 0
    loop: start=0, step=1, limit=4
    $region2: #{tpu_custom_call.1} parent=1 // loop_pre_header
      _
    $region3: #{tpu_custom_call.1} parent=1 // loop_header
      %s12 = sphi 0, %s16
      %p13 = scmp.ge.s32.totalorder %s12, 4
      %s20 = sphi 0, %s20
      %s22 = sphi 0, %s20
      %s23 = sphi 0, %s22
      %s37 = sphi 0, %s23
      %s41 = sphi 0, %s41
      %s43 = sphi 0, %s41
      %s44 = sphi 0, %s43
      %s58 = sphi 0, %s44
      %s64 = sphi 0, %s66
      %s67 = sphi 0, %s64
      %s68 = sphi 0, %s67
      %s84 = sphi 0, %s68
      %s90 = sphi 0, %s92
      %s93 = sphi 0, %s90
      %s94 = sphi 0, %s93
      %s110 = sphi 0, %s94
    $region4: #{tpu_custom_call.1} parent=1 // loop_header_branch
      %15 = sbr.rel (%p13) target = $region8
    $region5: #{tpu_custom_call.1} parent=1 // loop_body
      %s17 = ssub.s32 %s12, 1
      %s18 = ssub.s32 %s12, 2
      %s19 = sadd.s32 %s12, 1
      %s21 = sadd.s32 %s20, 1
      %p24 = scmp.eq.s32.totalorder %s12, 1
      %p25 = scmp.ne.s32.totalorder %s20, %s22
      %p26 = scmp.eq.s32.totalorder %s12, 0
      %p27 = por %p25, %p26
      %p28 = scmp.ne.s32.totalorder %s20, %s22
      %p29 = scmp.eq.s32.totalorder %s17, 1
      %p30 = por %p28, %p29
      %p31 = scmp.ne.s32.totalorder %s22, %s23
      %p32 = scmp.eq.s32.totalorder %s17, 0
      %p33 = por %p31, %p32
      %p34 = scmp.ne.s32.totalorder %s22, %s23
      %p35 = scmp.eq.s32.totalorder %s18, 1
      %p36 = por %p34, %p35
      %p38 = scmp.ne.s32.totalorder %s23, %s37
      %p39 = scmp.eq.s32.totalorder %s18, 0
      %p40 = por %p38, %p39
      %s42 = sadd.s32 %s41, 1
      %p45 = scmp.eq.s32.totalorder %s12, 1
      %p46 = scmp.ne.s32.totalorder %s41, %s43
      %p47 = scmp.eq.s32.totalorder %s12, 0
      %p48 = por %p46, %p47
      %p49 = scmp.ne.s32.totalorder %s41, %s43
      %p50 = scmp.eq.s32.totalorder %s17, 1
      %p51 = por %p49, %p50
      %p52 = scmp.ne.s32.totalorder %s43, %s44
      %p53 = scmp.eq.s32.totalorder %s17, 0
      %p54 = por %p52, %p53
      %p55 = scmp.ne.s32.totalorder %s43, %s44
      %p56 = scmp.eq.s32.totalorder %s18, 1
      %p57 = por %p55, %p56
      %p59 = scmp.ne.s32.totalorder %s44, %s58
      %p60 = scmp.eq.s32.totalorder %s18, 0
      %p61 = por %p59, %p60
      %s62 = ssub.s32 %s12, %s19
      %p63 = scmp.eq.s32.totalorder %s62, 0
      %s65 = sadd.s32 %s64, 1
      %s66 = scalar_select %p63, %s64, %s65
      %p69 = pneg %p63
      %p70 = scmp.eq.s32.totalorder %s12, 1
      %p71 = por %p69, %p70
      %p72 = scmp.ne.s32.totalorder %s64, %s67
      %p73 = scmp.eq.s32.totalorder %s12, 0
      %p74 = por %p72, %p73
      %p75 = scmp.ne.s32.totalorder %s64, %s67
      %p76 = scmp.eq.s32.totalorder %s17, 1
      %p77 = por %p75, %p76
      %p78 = scmp.ne.s32.totalorder %s67, %s68
      %p79 = scmp.eq.s32.totalorder %s17, 0
      %p80 = por %p78, %p79
      %p81 = scmp.ne.s32.totalorder %s67, %s68
      %p82 = scmp.eq.s32.totalorder %s18, 1
      %p83 = por %p81, %p82
      %p85 = scmp.ne.s32.totalorder %s68, %s84
      %p86 = scmp.eq.s32.totalorder %s18, 0
      %p87 = por %p85, %p86
      %s88 = ssub.s32 %s12, %s19
      %p89 = scmp.eq.s32.totalorder %s88, 0
      %s91 = sadd.s32 %s90, 1
      %s92 = scalar_select %p89, %s90, %s91
      %p95 = pneg %p89
      %p96 = scmp.eq.s32.totalorder %s12, 1
      %p97 = por %p95, %p96
      %p98 = scmp.ne.s32.totalorder %s90, %s93
      %p99 = scmp.eq.s32.totalorder %s12, 0
      %p100 = por %p98, %p99
      %p101 = scmp.ne.s32.totalorder %s90, %s93
      %p102 = scmp.eq.s32.totalorder %s17, 1
      %p103 = por %p101, %p102
      %p104 = scmp.ne.s32.totalorder %s93, %s94
      %p105 = scmp.eq.s32.totalorder %s17, 0
      %p106 = por %p104, %p105
      %p107 = scmp.ne.s32.totalorder %s93, %s94
      %p108 = scmp.eq.s32.totalorder %s18, 1
      %p109 = por %p107, %p108
      %p111 = scmp.ne.s32.totalorder %s94, %s110
      %p112 = scmp.eq.s32.totalorder %s18, 0
      %p113 = por %p111, %p112
      %p114 = scmp.le.s32.totalorder 1, %s12
      %p115 = scmp.lt.s32.totalorder %s12, 3
      %p116 = pnand %p114, %p115
      %p117 = pneg %p116
      // Predicated region
      $region9: #{tpu_custom_call.1} parent=5 // pred_check
        _
      $region10: #{tpu_custom_call.1} parent=5 // pred_check_branch
        %119 = sbr.rel (%p116) target = $region12
      $region11: #{tpu_custom_call.1} parent=5 // pred_region
        %s120 = ssub.s32 %s12, 1
        // Predicated region
        $region13: #{tpu_custom_call.1} parent=11 // pred_check
          %p121 = pneg %p33
        $region14: #{tpu_custom_call.1} parent=11 // pred_check_branch
          %123 = sbr.rel (%p121) target = $region16
        $region15: #{tpu_custom_call.1} parent=11 // pred_region
          _
        $region16: #{tpu_custom_call.1} parent=11 // pred_fallthru
          _
        // Predicated region
        $region17: #{tpu_custom_call.1} parent=11 // pred_check
          %p124 = pneg %p54
        $region18: #{tpu_custom_call.1} parent=11 // pred_check_branch
          %126 = sbr.rel (%p124) target = $region20
        $region19: #{tpu_custom_call.1} parent=11 // pred_region
          _
        $region20: #{tpu_custom_call.1} parent=11 // pred_fallthru
          _
      $region12: #{tpu_custom_call.1} parent=5 // pred_fallthru
        _
      %p127 = scmp.lt.s32.totalorder %s12, 2
      // Predicated region
      $region21: #{tpu_custom_call.1} parent=5 // pred_check
        %p128 = pneg %p127
      $region22: #{tpu_custom_call.1} parent=5 // pred_check_branch
        %130 = sbr.rel (%p128) target = $region24
      $region23: #{tpu_custom_call.1} parent=5 // pred_region
        // Predicated region
        $region25: #{tpu_custom_call.1} parent=23 // pred_check
          %p131 = pneg %p74
        $region26: #{tpu_custom_call.1} parent=23 // pred_check_branch
          %133 = sbr.rel (%p131) target = $region28
        $region27: #{tpu_custom_call.1} parent=23 // pred_region
          %p134 = scmp.lt.s32.totalorder %s12, 1
          %s135 = scalar_select %p134, %s12, 1
          %s136 = smul.addr %s135, 8
          %s137 = scalar_lea.vmem %s2, %s136
        $region28: #{tpu_custom_call.1} parent=23 // pred_fallthru
          _
      $region24: #{tpu_custom_call.1} parent=5 // pred_fallthru
        _
      %p138 = scmp.le.s32.totalorder 1, %s12
      %p139 = scmp.lt.s32.totalorder %s12, 3
      %p140 = pnand %p138, %p139
      %p141 = pneg %p140
      // Predicated region
      $region29: #{tpu_custom_call.1} parent=5 // pred_check
        _
      $region30: #{tpu_custom_call.1} parent=5 // pred_check_branch
        %143 = sbr.rel (%p140) target = $region32
      $region31: #{tpu_custom_call.1} parent=5 // pred_region
        %s144 = ssub.s32 %s12, 1
        %p145 = pneg %p33
        %p146 = pneg %p30
        %p147 = pneg %p54
        %p148 = pneg %p51
        %p149 = scmp.lt.s32.totalorder %s17, 1
        %s150 = scalar_select %p149, %s17, 1
        %s151 = smul.addr %s150, 8
        %s152 = scalar_lea.vmem %s2, %s151
        %p153 = pneg %p80
        %p154 = pneg %p77
        %p155 = pneg %p106
        %p156 = pneg %p103
        %s157 = sand.u32 %s93, 1
        %s158 = scalar_lea.sflag [#allocation3], %s157
        %s159 = sand.u32 %s93, 1
        %s160 = smul.addr %s159, 8
        %s161 = scalar_lea.vmem [#allocation2], %s160
        %p162 = scmp.lt.s32.totalorder %s17, 1
        %s163 = scalar_select %p162, %s17, 1
        %s164 = smul.addr %s163, 8
        %s165 = scalar_lea.vmem %s2, %s164
        %v166 = vld [vmem:[%s165] sm:$0x3f]
        %v167 = vld [vmem:[%s0] sm:$0x3f]
        %169 = vset.pattern.permute.xlu0 0
        %170 = vperm.xlu0 %169, %v167
        %v171 = vpop.permute.xlu0 %170
        %v173 = vmul.f32 %v166, %v171
        %v174 = vld [vmem:[%s1] sm:$0x3f]
        %176 = vset.pattern.permute.xlu0 0
        %177 = vperm.xlu0 %176, %v174
        %v178 = vpop.permute.xlu0 %177
        %v180 = vsub.f32 %v173, %v178
        %181 = vst [vmem:[%s161] sm:$0x3f] %v180
        %s182 = sand.u32 %s93, 1
        %s183 = scalar_lea.sflag [#allocation3], %s182
        %s184 = sand.u32 %s93, 1
        %s185 = smul.addr %s184, 8
        %s186 = scalar_lea.vmem [#allocation2], %s185
        // Predicated region
        $region33: #{tpu_custom_call.1} parent=31 // pred_check
          %p187 = pneg %p103
        $region34: #{tpu_custom_call.1} parent=31 // pred_check_branch
          %189 = sbr.rel (%p187) target = $region36
        $region35: #{tpu_custom_call.1} parent=31 // pred_region
          %191 = vsyncadd %s183, 0
          %s192 = smul.addr %s17, 8
          %s193 = scalar_lea.hbm %s3, %s192
          %s195 = sshll.u32 %s186, 4
          %s196 = int_to_ptr.vmem [resolvable:$true] %s195
          %s197 = sshll.u32 %s193, 4
          %s198 = int_to_ptr.hbm [resolvable:$true] %s197
          %200 = dma.vmem_to_hbm [thread:$0]  %s196, 128, %s198, %s183
        $region36: #{tpu_custom_call.1} parent=31 // pred_fallthru
          _
      $region32: #{tpu_custom_call.1} parent=5 // pred_fallthru
        _
      %p201 = scmp.le.s32.totalorder 2, %s12
      // Predicated region
      $region37: #{tpu_custom_call.1} parent=5 // pred_check
        %p202 = pneg %p201
      $region38: #{tpu_custom_call.1} parent=5 // pred_check_branch
        %204 = sbr.rel (%p202) target = $region40
      $region39: #{tpu_custom_call.1} parent=5 // pred_region
        %s205 = ssub.s32 %s12, 2
        // Predicated region
        $region41: #{tpu_custom_call.1} parent=39 // pred_check
          %p206 = pneg %p109
        $region42: #{tpu_custom_call.1} parent=39 // pred_check_branch
          %208 = sbr.rel (%p206) target = $region44
        $region43: #{tpu_custom_call.1} parent=39 // pred_region
          %s209 = sand.u32 %s94, 1
          %s210 = scalar_lea.sflag [#allocation3], %s209
          %s211 = sand.u32 %s94, 1
          %s212 = smul.addr %s211, 8
          %s213 = scalar_lea.vmem [#allocation2], %s212
          %215 = dma.done %s210, 128
        $region44: #{tpu_custom_call.1} parent=39 // pred_fallthru
          _
      $region40: #{tpu_custom_call.1} parent=5 // pred_fallthru
        _
    $region6: #{tpu_custom_call.1} parent=1 // loop_footer
      %s16 = sadd.s32 1, %s12
    $region7: #{tpu_custom_call.1} parent=1 // loop_footer_branch
      %11 = sbr.rel target = $region3
    $region8: #{tpu_custom_call.1} parent=1 // loop_exit
      _
    %216 = vsyncpa [#allocation3], 1
    %s217 = scalar_lea.sflag [#allocation3], 1
    %218 = vsyncpa %s217, 1

</llo_original>
